<compile_context>
chip_gen: v7x
topology: tpu7x:2x2x1
jax: 0.10.0
libtpu: 0.0.40
codegen_flags: <defaults>
</compile_context>

<pallas_src>
import functools

import jax
import jax.numpy as jnp
from jax import lax
from jax.experimental import pallas as pl
from jax.experimental.pallas import tpu as pltpu

UPDATE_LR = 0.4            # unused: fast weights are dead code by module design
UPDATE_STEP_TEST = 10
NUM_SLOTS = UPDATE_STEP_TEST + 1
IN_FEATURES = 784          # 1 * 28 * 28
NUM_CLASSES = 5


# ---------------------------------------------------------------- kernel ----

def _maml_query_kernel(xq_ref, wt_ref, b_ref, yq_ref, accs_ref, *, inv_querysz):
    """Fused: logits = xq @ Wt + b ; pred = argmax(logits, 1);
    accs = [count/querysz, count/querysz, 0, ..., 0] written as one (1, 11) row."""
    # Canonical (M, K) x (K, N) on the MXU: (Bq, 784) @ (784, 5) -> (Bq, 5), f32.
    logits = jnp.dot(xq_ref[...], wt_ref[...],
                     preferred_element_type=jnp.float32) + b_ref[...]

    # softmax is monotonic => argmax(softmax(z), 1) == argmax(z, 1).
    # Keep the tie-break comparison in f32 (exact equality vs. the row max).
    m, n = logits.shape
    mx = jnp.max(logits, axis=1, keepdims=True)
    col = lax.broadcasted_iota(jnp.int32, (m, n), 1)
    idx = jnp.where(logits == mx, col, n)              # non-max -> sentinel n
    pred = jnp.min(idx, axis=1, keepdims=True)         # first maximum (torch tie-break)

    correct = jnp.sum((pred == yq_ref[...]).astype(jnp.float32))   # scalar f32
    acc = correct * jnp.float32(inv_querysz)

    # accs row: slots 0 and 1 get the accuracy, slots 2..10 stay 0 (the
    # reference forward never writes corrects[2:]).
    slot = lax.broadcasted_iota(jnp.int32, (1, NUM_SLOTS), 1)
    accs_ref[...] = jnp.where(slot < 2, acc, jnp.float32(0.0))


# --------------------------------------------------------------- wrapper ----

@jax.jit
def partial_maml(x_spt, y_spt, x_qry, y_qry, w, b):
    # x_spt / y_spt intentionally unused: FakeMamlInner ignores the fast
    # weights, so the inner-loop step cannot influence the returned accs.
    del x_spt, y_spt

    querysz = x_qry.shape[0]
    xq = x_qry.reshape(querysz, -1).astype(jnp.float32)        # (Bq, 784)
    wt = jnp.transpose(w).astype(jnp.float32)                  # (784, 5)  canonical RHS
    b2d = b.reshape(1, -1).astype(jnp.float32)                 # (1, 5)
    yq = y_qry.reshape(-1, 1).astype(jnp.int32)                # (Bq, 1)

    kernel = functools.partial(_maml_query_kernel, inv_querysz=1.0 / querysz)

    vmem_spec = pl.BlockSpec(memory_space=pltpu.MemorySpace.VMEM)
    accs_2d = pl.pallas_call(
        kernel,
        out_shape=jax.ShapeDtypeStruct((1, NUM_SLOTS), jnp.float32),
        in_specs=[vmem_spec, vmem_spec, vmem_spec, vmem_spec],
        out_specs=vmem_spec,
    )(xq, wt, b2d, yq)

    return accs_2d[0]                                          # (11,) f32


# ------------------------------------------------------------------ main ----

if __name__ == "__main__":
    key = jax.random.PRNGKey(0)
    k_xs, k_ys, k_xq, k_yq, k_w, k_b = jax.random.split(key, 6)

    B_SPT, B_QRY = 8, 16
    x_spt = jax.random.normal(k_xs, (B_SPT, 1, 28, 28), jnp.float32)
    y_spt = jax.random.randint(k_ys, (B_SPT,), 0, NUM_CLASSES, jnp.int32)
    x_qry = jax.random.normal(k_xq, (B_QRY, 1, 28, 28), jnp.float32)
    y_qry = jax.random.randint(k_yq, (B_QRY,), 0, NUM_CLASSES, jnp.int32)

    # deterministic synthetic Linear(784, 5) parameters
    w = 0.05 * jax.random.normal(k_w, (NUM_CLASSES, IN_FEATURES), jnp.float32)
    b = 0.05 * jax.random.normal(k_b, (NUM_CLASSES,), jnp.float32)

    accs = partial_maml(x_spt, y_spt, x_qry, y_qry, w, b)
    accs = jax.block_until_ready(accs)
    assert accs.shape == (NUM_SLOTS,) and accs.dtype == jnp.float32

    # Pure-JAX reference of the module's observable output.
    xq_ref = x_qry.reshape(B_QRY, -1)
    logits_ref = xq_ref @ w.T + b
    pred_ref = jnp.argmax(jax.nn.softmax(logits_ref, axis=1), axis=1)
    correct_ref = jnp.sum(pred_ref == y_qry).astype(jnp.float32)
    accs_ref = jnp.zeros((NUM_SLOTS,), jnp.float32)
    accs_ref = accs_ref.at[0].set(correct_ref).at[1].set(correct_ref) / B_QRY
    assert jnp.allclose(accs, accs_ref), (accs, accs_ref)

    print("KERNEL_OK")
</pallas_src>

<mosaic_0001>
module attributes {stable_mosaic.version = 11 : i64} {
  func.func @_maml_query_kernel(%arg0: memref<16x784xf32, #tpu.memory_space<vmem>>, %arg1: memref<784x5xf32, #tpu.memory_space<vmem>>, %arg2: memref<1x5xf32, #tpu.memory_space<vmem>>, %arg3: memref<16x1xi32, #tpu.memory_space<vmem>>, %arg4: memref<1x11xf32, #tpu.memory_space<vmem>>) attributes {dimension_semantics = [], scalar_prefetch = 0 : i64, scratch_operands = 0 : i64, tpu.core_type = #tpu.core_type<tc>} {
    %c0 = arith.constant 0 : index
    %c0_0 = arith.constant 0 : index
    %0 = vector.load %arg0[%c0, %c0_0] : memref<16x784xf32, #tpu.memory_space<vmem>>, vector<16x784xf32>
    %c0_1 = arith.constant 0 : index
    %c0_2 = arith.constant 0 : index
    %1 = vector.load %arg1[%c0_1, %c0_2] : memref<784x5xf32, #tpu.memory_space<vmem>>, vector<784x5xf32>
    %cst = arith.constant dense<0.000000e+00> : vector<16x5xf32>
    %2 = tpu.matmul %0, %1, %cst {dimension_numbers = #tpu.dot_dimension_numbers<[1], [0], [0], [1], [0, 0, 1, 1], [], []>} : vector<16x784xf32>, vector<784x5xf32>, vector<16x5xf32> -> vector<16x5xf32>
    %c0_3 = arith.constant 0 : index
    %c0_4 = arith.constant 0 : index
    %3 = vector.load %arg2[%c0_3, %c0_4] : memref<1x5xf32, #tpu.memory_space<vmem>>, vector<1x5xf32>
    %4 = vector.broadcast %3 : vector<1x5xf32> to vector<16x5xf32>
    %5 = arith.addf %2, %4 : vector<16x5xf32>
    %cst_5 = arith.constant dense<0xFF800000> : vector<16xf32>
    %6 = vector.multi_reduction <maximumf>, %5, %cst_5 [1] : vector<16x5xf32> to vector<16xf32>
    %7 = vector.shape_cast %6 : vector<16xf32> to vector<16x1xf32>
    %8 = tpu.iota {dimensions = array<i32: 1>} : vector<16x5xi32>
    %9 = vector.broadcast %7 : vector<16x1xf32> to vector<16x5xf32>
    %10 = arith.cmpf oeq, %5, %9 : vector<16x5xf32>
    %c5_i32 = arith.constant 5 : i32
    %11 = vector.broadcast %c5_i32 : i32 to vector<16x5xi32>
    %12 = arith.select %10, %8, %11 : vector<16x5xi1>, vector<16x5xi32>
    %cst_6 = arith.constant dense<2147483647> : vector<16xi32>
    %13 = vector.multi_reduction <minsi>, %12, %cst_6 [1] : vector<16x5xi32> to vector<16xi32>
    %14 = vector.shape_cast %13 : vector<16xi32> to vector<16x1xi32>
    %c0_7 = arith.constant 0 : index
    %c0_8 = arith.constant 0 : index
    %15 = vector.load %arg3[%c0_7, %c0_8] : memref<16x1xi32, #tpu.memory_space<vmem>>, vector<16x1xi32>
    %16 = arith.cmpi eq, %14, %15 : vector<16x1xi32>
    %17 = arith.extui %16 : vector<16x1xi1> to vector<16x1xi32>
    %18 = arith.sitofp %17 : vector<16x1xi32> to vector<16x1xf32>
    %19 = vector.shape_cast %18 : vector<16x1xf32> to vector<1x16x1xf32>
    %cst_9 = arith.constant dense<0.000000e+00> : vector<1xf32>
    %20 = vector.multi_reduction <add>, %19, %cst_9 [1, 2] : vector<1x16x1xf32> to vector<1xf32>
    %21 = vector.shape_cast %20 : vector<1xf32> to vector<1x1x1xf32>
    %22 = vector.extract %21[0, 0, 0] : f32 from vector<1x1x1xf32>
    %cst_10 = arith.constant 6.250000e-02 : f32
    %23 = arith.mulf %22, %cst_10 : f32
    %24 = tpu.iota {dimensions = array<i32: 1>} : vector<1x11xi32>
    %c2_i32 = arith.constant 2 : i32
    %25 = vector.broadcast %c2_i32 : i32 to vector<1x11xi32>
    %26 = arith.cmpi slt, %24, %25 : vector<1x11xi32>
    %cst_11 = arith.constant 0.000000e+00 : f32
    %27 = vector.broadcast %23 : f32 to vector<1x11xf32>
    %28 = vector.broadcast %cst_11 : f32 to vector<1x11xf32>
    %29 = arith.select %26, %27, %28 : vector<1x11xi1>, vector<1x11xf32>
    %c0_12 = arith.constant 0 : index
    %c0_13 = arith.constant 0 : index
    %30 = vector.load %arg4[%c0_12, %c0_13] : memref<1x11xf32, #tpu.memory_space<vmem>>, vector<1x11xf32>
    tpu.vector_store %arg4[%c0_12, %c0_13], %29 {strides = array<i32>} : memref<1x11xf32, #tpu.memory_space<vmem>>, vector<1x11xf32>,
    return
  }
}

</mosaic_0001>

<llo_original>
// kernel: partial_maml.1
$region0: #{partial_maml.1}
  #allocation0 [shape = 'u32[]', space=smem, size = 0x4, offset = 0x4, fixed_abs, tag = 'smem constant byte address 0x4 - core index']
  #allocation1 [shape = 'u32[144,128]{1,0:T(1,128)}', space=vmem, size = 0x12000, scoped, tag = 'internal scratch']
  %s0 = inlined_call_operand.vmem [shape: f32[16,784], index: 0, kind: input, shape index: {}]
  %s1 = inlined_call_operand.vmem [shape: f32[784,5], index: 1, kind: input, shape index: {}]
  %s2 = inlined_call_operand.vmem [shape: f32[1,5], index: 2, kind: input, shape index: {}]
  %s3 = inlined_call_operand.vmem [shape: s32[16,1], index: 3, kind: input, shape index: {}]
  %s4 = inlined_call_operand.hbm [shape: f32[1,11], index: 4, kind: output, shape index: {}]
  %s5 = sld [smem:[#allocation0]]
  $region26: #{partial_maml.1} parent=0
    _
  %s7 = ssub.s32 1, %s5
  %s8 = scalar_select 0, %s7, %s5
  $region1: #{partial_maml.1} parent=0
    #allocation2 [shape = 'u8[512]{0}', space=vmem, size = 0x400, scoped, tag = 'output window, operand 0, single buffered']
    #allocation3 [shape = 's32[1]{0}', space=sflag, size = 0x4, scoped, tag = 'scoped memory for partial_maml.1']
    %9 = vsyncpa [#allocation3], 0
    // Predicated region
    $region2: #{partial_maml.1} parent=1 // pred_check
      _
    $region3: #{partial_maml.1} parent=1 // pred_check_branch
      %11 = sbr.rel (0) target = $region5
    $region4: #{partial_maml.1} parent=1 // pred_region
      _
    $region5: #{partial_maml.1} parent=1 // pred_fallthru
      _
    // Predicated region
    $region6: #{partial_maml.1} parent=1 // pred_check
      _
    $region7: #{partial_maml.1} parent=1 // pred_check_branch
      %13 = sbr.rel (0) target = $region9
    $region8: #{partial_maml.1} parent=1 // pred_region
      _
    $region9: #{partial_maml.1} parent=1 // pred_fallthru
      _
    // Predicated region
    $region10: #{partial_maml.1} parent=1 // pred_check
      _
    $region11: #{partial_maml.1} parent=1 // pred_check_branch
      %15 = sbr.rel (0) target = $region13
    $region12: #{partial_maml.1} parent=1 // pred_region
      _
    $region13: #{partial_maml.1} parent=1 // pred_fallthru
      _
    // Predicated region
    $region14: #{partial_maml.1} parent=1 // pred_check
      _
    $region15: #{partial_maml.1} parent=1 // pred_check_branch
      %17 = sbr.rel (0) target = $region17
    $region16: #{partial_maml.1} parent=1 // pred_region
      _
    $region17: #{partial_maml.1} parent=1 // pred_fallthru
      _
    %v18 = vld [vmem:[%s0] sm:$0xff]
    %v19 = vld [vmem:[%s0 + $0x8] sm:$0xff]
    %v20 = vld [vmem:[%s0 + $0x10] sm:$0xff]
    %v21 = vld [vmem:[%s0 + $0x18] sm:$0xff]
    %v22 = vld [vmem:[%s0 + $0x20] sm:$0xff]
    %v23 = vld [vmem:[%s0 + $0x28] sm:$0xff]
    %v24 = vld [vmem:[%s0 + $0x30] sm:$0xff]
    %v25 = vld [vmem:[%s0 + $0x38] sm:$0xff]
    %v26 = vld [vmem:[%s0 + $0x40] sm:$0xff]
    %v27 = vld [vmem:[%s0 + $0x48] sm:$0xff]
    %v28 = vld [vmem:[%s0 + $0x50] sm:$0xff]
    %v29 = vld [vmem:[%s0 + $0x58] sm:$0xff]
    %v30 = vld [vmem:[%s0 + $0x60] sm:$0xff]
    %v31 = vld [vmem:[%s0 + $0x68] sm:$0xff]
    %v32 = vld [vmem:[%s1] sm:$0xff]
    %v33 = vld [vmem:[%s1 + $0x8] sm:$0xff]
    %v34 = vld [vmem:[%s1 + $0x10] sm:$0xff]
    %v35 = vld [vmem:[%s1 + $0x18] sm:$0xff]
    %v36 = vld [vmem:[%s1 + $0x20] sm:$0xff]
    %v37 = vld [vmem:[%s1 + $0x28] sm:$0xff]
    %v38 = vld [vmem:[%s1 + $0x30] sm:$0xff]
    %v39 = vld [vmem:[%s1 + $0x38] sm:$0xff]
    %v40 = vld [vmem:[%s1 + $0x40] sm:$0xff]
    %v41 = vld [vmem:[%s1 + $0x48] sm:$0xff]
    %v42 = vld [vmem:[%s1 + $0x50] sm:$0xff]
    %v43 = vld [vmem:[%s1 + $0x58] sm:$0xff]
    %v44 = vld [vmem:[%s1 + $0x60] sm:$0xff]
    %v45 = vld [vmem:[%s1 + $0x68] sm:$0xff]
    %v46 = vld [vmem:[%s1 + $0x70] sm:$0xff]
    %v47 = vld [vmem:[%s1 + $0x78] sm:$0xff]
    %v48 = vld [vmem:[%s1 + $0x80] sm:$0xff]
    %v49 = vld [vmem:[%s1 + $0x88] sm:$0xff]
    %v50 = vld [vmem:[%s1 + $0x90] sm:$0xff]
    %v51 = vld [vmem:[%s1 + $0x98] sm:$0xff]
    %v52 = vld [vmem:[%s1 + $0xa0] sm:$0xff]
    %v53 = vld [vmem:[%s1 + $0xa8] sm:$0xff]
    %v54 = vld [vmem:[%s1 + $0xb0] sm:$0xff]
    %v55 = vld [vmem:[%s1 + $0xb8] sm:$0xff]
    %v56 = vld [vmem:[%s1 + $0xc0] sm:$0xff]
    %v57 = vld [vmem:[%s1 + $0xc8] sm:$0xff]
    %v58 = vld [vmem:[%s1 + $0xd0] sm:$0xff]
    %v59 = vld [vmem:[%s1 + $0xd8] sm:$0xff]
    %v60 = vld [vmem:[%s1 + $0xe0] sm:$0xff]
    %v61 = vld [vmem:[%s1 + $0xe8] sm:$0xff]
    %v62 = vld [vmem:[%s1 + $0xf0] sm:$0xff]
    %v63 = vld [vmem:[%s1 + $0xf8] sm:$0xff]
    %v64 = vld [vmem:[%s1 + $0x100] sm:$0xff]
    %v65 = vld [vmem:[%s1 + $0x108] sm:$0xff]
    %v66 = vld [vmem:[%s1 + $0x110] sm:$0xff]
    %v67 = vld [vmem:[%s1 + $0x118] sm:$0xff]
    %v68 = vld [vmem:[%s1 + $0x120] sm:$0xff]
    %v69 = vld [vmem:[%s1 + $0x128] sm:$0xff]
    %v70 = vld [vmem:[%s1 + $0x130] sm:$0xff]
    %v71 = vld [vmem:[%s1 + $0x138] sm:$0xff]
    %v72 = vld [vmem:[%s1 + $0x140] sm:$0xff]
    %v73 = vld [vmem:[%s1 + $0x148] sm:$0xff]
    %v74 = vld [vmem:[%s1 + $0x150] sm:$0xff]
    %v75 = vld [vmem:[%s1 + $0x158] sm:$0xff]
    %v76 = vld [vmem:[%s1 + $0x160] sm:$0xff]
    %v77 = vld [vmem:[%s1 + $0x168] sm:$0xff]
    %v78 = vld [vmem:[%s1 + $0x170] sm:$0xff]
    %v79 = vld [vmem:[%s1 + $0x178] sm:$0xff]
    %v80 = vld [vmem:[%s1 + $0x180] sm:$0xff]
    %v81 = vld [vmem:[%s1 + $0x188] sm:$0xff]
    %v82 = vld [vmem:[%s1 + $0x190] sm:$0xff]
    %v83 = vld [vmem:[%s1 + $0x198] sm:$0xff]
    %v84 = vld [vmem:[%s1 + $0x1a0] sm:$0xff]
    %v85 = vld [vmem:[%s1 + $0x1a8] sm:$0xff]
    %v86 = vld [vmem:[%s1 + $0x1b0] sm:$0xff]
    %v87 = vld [vmem:[%s1 + $0x1b8] sm:$0xff]
    %v88 = vld [vmem:[%s1 + $0x1c0] sm:$0xff]
    %v89 = vld [vmem:[%s1 + $0x1c8] sm:$0xff]
    %v90 = vld [vmem:[%s1 + $0x1d0] sm:$0xff]
    %v91 = vld [vmem:[%s1 + $0x1d8] sm:$0xff]
    %v92 = vld [vmem:[%s1 + $0x1e0] sm:$0xff]
    %v93 = vld [vmem:[%s1 + $0x1e8] sm:$0xff]
    %v94 = vld [vmem:[%s1 + $0x1f0] sm:$0xff]
    %v95 = vld [vmem:[%s1 + $0x1f8] sm:$0xff]
    %v96 = vld [vmem:[%s1 + $0x200] sm:$0xff]
    %v97 = vld [vmem:[%s1 + $0x208] sm:$0xff]
    %v98 = vld [vmem:[%s1 + $0x210] sm:$0xff]
    %v99 = vld [vmem:[%s1 + $0x218] sm:$0xff]
    %v100 = vld [vmem:[%s1 + $0x220] sm:$0xff]
    %v101 = vld [vmem:[%s1 + $0x228] sm:$0xff]
    %v102 = vld [vmem:[%s1 + $0x230] sm:$0xff]
    %v103 = vld [vmem:[%s1 + $0x238] sm:$0xff]
    %v104 = vld [vmem:[%s1 + $0x240] sm:$0xff]
    %v105 = vld [vmem:[%s1 + $0x248] sm:$0xff]
    %v106 = vld [vmem:[%s1 + $0x250] sm:$0xff]
    %v107 = vld [vmem:[%s1 + $0x258] sm:$0xff]
    %v108 = vld [vmem:[%s1 + $0x260] sm:$0xff]
    %v109 = vld [vmem:[%s1 + $0x268] sm:$0xff]
    %v110 = vld [vmem:[%s1 + $0x270] sm:$0xff]
    %v111 = vld [vmem:[%s1 + $0x278] sm:$0xff]
    %v112 = vld [vmem:[%s1 + $0x280] sm:$0xff]
    %v113 = vld [vmem:[%s1 + $0x288] sm:$0xff]
    %v114 = vld [vmem:[%s1 + $0x290] sm:$0xff]
    %v115 = vld [vmem:[%s1 + $0x298] sm:$0xff]
    %v116 = vld [vmem:[%s1 + $0x2a0] sm:$0xff]
    %v117 = vld [vmem:[%s1 + $0x2a8] sm:$0xff]
    %v118 = vld [vmem:[%s1 + $0x2b0] sm:$0xff]
    %v119 = vld [vmem:[%s1 + $0x2b8] sm:$0xff]
    %v120 = vld [vmem:[%s1 + $0x2c0] sm:$0xff]
    %v121 = vld [vmem:[%s1 + $0x2c8] sm:$0xff]
    %v122 = vld [vmem:[%s1 + $0x2d0] sm:$0xff]
    %v123 = vld [vmem:[%s1 + $0x2d8] sm:$0xff]
    %v124 = vld [vmem:[%s1 + $0x2e0] sm:$0xff]
    %v125 = vld [vmem:[%s1 + $0x2e8] sm:$0xff]
    %v126 = vld [vmem:[%s1 + $0x2f0] sm:$0xff]
    %v127 = vld [vmem:[%s1 + $0x2f8] sm:$0xff]
    %v128 = vld [vmem:[%s1 + $0x300] sm:$0xff]
    %v129 = vld [vmem:[%s1 + $0x308] sm:$0xff]
    %v130 = vld [vmem:[%s2] sm:$0x1]
    %v132 = vlaneseq
    %v133 = vshrl.u32 %v132, 7
    %v134 = vsub.s32 0, %v133
    %v135 = vrot.slane %v130, %v134
    %vm137 = vcmask 130048
    %v139 = vsel %vm137, %v24, 0
    %v142 = vsel %vm137, %v31, 0
    %144 = vmatprep.subr.mxu0 0.0
    %145 = vmatpush1.msra.mxu0 %v32
    %146 = vmatprep.subr.mxu0 0.0
    %147 = vmatpush1.msra.mxu0 %v33
    %148 = vmatprep.subr.mxu0 0.0
    %149 = vmatpush1.msra.mxu0 %v34
    %150 = vmatprep.subr.mxu0 0.0
    %151 = vmatpush1.msra.mxu0 %v35
    %152 = vmatprep.subr.mxu0 0.0
    %153 = vmatpush1.msra.mxu0 %v36
    %154 = vmatprep.subr.mxu0 0.0
    %155 = vmatpush1.msra.mxu0 %v37
    %156 = vmatprep.subr.mxu0 0.0
    %157 = vmatpush1.msra.mxu0 %v38
    %158 = vmatprep.subr.mxu0 0.0
    %159 = vmatpush1.msra.mxu0 %v39
    %160 = vmatprep.subr.mxu0 0.0
    %161 = vmatpush1.msra.mxu0 %v40
    %162 = vmatprep.subr.mxu0 0.0
    %163 = vmatpush1.msra.mxu0 %v41
    %164 = vmatprep.subr.mxu0 0.0
    %165 = vmatpush1.msra.mxu0 %v42
    %166 = vmatprep.subr.mxu0 0.0
    %167 = vmatpush1.msra.mxu0 %v43
    %168 = vmatprep.subr.mxu0 0.0
    %169 = vmatpush1.msra.mxu0 %v44
    %170 = vmatprep.subr.mxu0 0.0
    %171 = vmatpush1.msra.mxu0 %v45
    %172 = vmatprep.subr.mxu0 0.0
    %173 = vmatpush1.msra.mxu0 %v46
    %174 = vmatprep.subr.mxu0 0.0
    %175 = vmatpush1.msra.mxu0 %v47
    %176 = vmatprep.subr.mxu0 0.0
    %177 = vmatpush1.msra.mxu0 %v48
    %178 = vmatprep.subr.mxu0 0.0
    %179 = vmatpush1.msra.mxu0 %v49
    %180 = vmatprep.subr.mxu0 0.0
    %181 = vmatpush1.msra.mxu0 %v50
    %182 = vmatprep.subr.mxu0 0.0
    %183 = vmatpush1.msra.mxu0 %v51
    %184 = vmatprep.subr.mxu0 0.0
    %185 = vmatpush1.msra.mxu0 %v52
    %186 = vmatprep.subr.mxu0 0.0
    %187 = vmatpush1.msra.mxu0 %v53
    %188 = vmatprep.subr.mxu0 0.0
    %189 = vmatpush1.msra.mxu0 %v54
    %190 = vmatprep.subr.mxu0 0.0
    %191 = vmatpush1.msra.mxu0 %v55
    %192 = vmatprep.subr.mxu0 0.0
    %193 = vmatpush1.msra.mxu0 %v56
    %194 = vmatprep.subr.mxu0 0.0
    %195 = vmatpush1.msra.mxu0 %v57
    %196 = vmatprep.subr.mxu0 0.0
    %197 = vmatpush1.msra.mxu0 %v58
    %198 = vmatprep.subr.mxu0 0.0
    %199 = vmatpush1.msra.mxu0 %v59
    %200 = vmatprep.subr.mxu0 0.0
    %201 = vmatpush1.msra.mxu0 %v60
    %202 = vmatprep.subr.mxu0 0.0
    %203 = vmatpush1.msra.mxu0 %v61
    %204 = vmatprep.subr.mxu0 0.0
    %205 = vmatpush1.msra.mxu0 %v62
    %206 = vmatprep.subr.mxu0 0.0
    %207 = vmatpush1.msra.mxu0 %v63
    %208 = vmatprep.mubr.f32.mxu0 %v19
    %209 = vmatmul.mubr.f32.gmra.mrb[0].mxu0 %v18
    %v210 = vpop.f32.mrb[0].mxu0
    %v211 = vadd.f32 %v135, %v210
    %v212 = vpop.f32.mrb[0].mxu0
    %213 = vmatprep.mubr.f32.mxu0 %v26
    %214 = vmatmul.mubr.f32.gmra.mrb[0].mxu0 %v25
    %v215 = vpop.f32.mrb[0].mxu0
    %v216 = vadd.f32 %v135, %v215
    %v217 = vpop.f32.mrb[0].mxu0
    %218 = vdwg.mxu0
    %219 = vmatprep.subr.mxu0 0.0
    %220 = vmatpush1.msra.mxu0 %v64
    %221 = vmatprep.subr.mxu0 0.0
    %222 = vmatpush1.msra.mxu0 %v65
    %223 = vmatprep.subr.mxu0 0.0
    %224 = vmatpush1.msra.mxu0 %v66
    %225 = vmatprep.subr.mxu0 0.0
    %226 = vmatpush1.msra.mxu0 %v67
    %227 = vmatprep.subr.mxu0 0.0
    %228 = vmatpush1.msra.mxu0 %v68
    %229 = vmatprep.subr.mxu0 0.0
    %230 = vmatpush1.msra.mxu0 %v69
    %231 = vmatprep.subr.mxu0 0.0
    %232 = vmatpush1.msra.mxu0 %v70
    %233 = vmatprep.subr.mxu0 0.0
    %234 = vmatpush1.msra.mxu0 %v71
    %235 = vmatprep.subr.mxu0 0.0
    %236 = vmatpush1.msra.mxu0 %v72
    %237 = vmatprep.subr.mxu0 0.0
    %238 = vmatpush1.msra.mxu0 %v73
    %239 = vmatprep.subr.mxu0 0.0
    %240 = vmatpush1.msra.mxu0 %v74
    %241 = vmatprep.subr.mxu0 0.0
    %242 = vmatpush1.msra.mxu0 %v75
    %243 = vmatprep.subr.mxu0 0.0
    %244 = vmatpush1.msra.mxu0 %v76
    %245 = vmatprep.subr.mxu0 0.0
    %246 = vmatpush1.msra.mxu0 %v77
    %247 = vmatprep.subr.mxu0 0.0
    %248 = vmatpush1.msra.mxu0 %v78
    %249 = vmatprep.subr.mxu0 0.0
    %250 = vmatpush1.msra.mxu0 %v79
    %251 = vmatprep.subr.mxu0 0.0
    %252 = vmatpush1.msra.mxu0 %v80
    %253 = vmatprep.subr.mxu0 0.0
    %254 = vmatpush1.msra.mxu0 %v81
    %255 = vmatprep.subr.mxu0 0.0
    %256 = vmatpush1.msra.mxu0 %v82
    %257 = vmatprep.subr.mxu0 0.0
    %258 = vmatpush1.msra.mxu0 %v83
    %259 = vmatprep.subr.mxu0 0.0
    %260 = vmatpush1.msra.mxu0 %v84
    %261 = vmatprep.subr.mxu0 0.0
    %262 = vmatpush1.msra.mxu0 %v85
    %263 = vmatprep.subr.mxu0 0.0
    %264 = vmatpush1.msra.mxu0 %v86
    %265 = vmatprep.subr.mxu0 0.0
    %266 = vmatpush1.msra.mxu0 %v87
    %267 = vmatprep.subr.mxu0 0.0
    %268 = vmatpush1.msra.mxu0 %v88
    %269 = vmatprep.subr.mxu0 0.0
    %270 = vmatpush1.msra.mxu0 %v89
    %271 = vmatprep.subr.mxu0 0.0
    %272 = vmatpush1.msra.mxu0 %v90
    %273 = vmatprep.subr.mxu0 0.0
    %274 = vmatpush1.msra.mxu0 %v91
    %275 = vmatprep.subr.mxu0 0.0
    %276 = vmatpush1.msra.mxu0 %v92
    %277 = vmatprep.subr.mxu0 0.0
    %278 = vmatpush1.msra.mxu0 %v93
    %279 = vmatprep.subr.mxu0 0.0
    %280 = vmatpush1.msra.mxu0 %v94
    %281 = vmatprep.subr.mxu0 0.0
    %282 = vmatpush1.msra.mxu0 %v95
    %283 = vmatprep.mubr.f32.mxu0 %v21
    %284 = vmatmul.mubr.f32.gmra.mrb[0].mxu0 %v20
    %v285 = vpop.f32.mrb[0].mxu0
    %v286 = vadd.f32 %v211, %v285
    %v287 = vpop.f32.mrb[0].mxu0
    %288 = vmatprep.mubr.f32.mxu0 %v28
    %289 = vmatmul.mubr.f32.gmra.mrb[0].mxu0 %v27
    %v290 = vpop.f32.mrb[0].mxu0
    %v291 = vadd.f32 %v216, %v290
    %v292 = vpop.f32.mrb[0].mxu0
    %293 = vdwg.mxu0
    %294 = vmatprep.subr.mxu0 0.0
    %295 = vmatpush1.msra.mxu0 %v96
    %296 = vmatprep.subr.mxu0 0.0
    %297 = vmatpush1.msra.mxu0 %v97
    %298 = vmatprep.subr.mxu0 0.0
    %299 = vmatpush1.msra.mxu0 %v98
    %300 = vmatprep.subr.mxu0 0.0
    %301 = vmatpush1.msra.mxu0 %v99
    %302 = vmatprep.subr.mxu0 0.0
    %303 = vmatpush1.msra.mxu0 %v100
    %304 = vmatprep.subr.mxu0 0.0
    %305 = vmatpush1.msra.mxu0 %v101
    %306 = vmatprep.subr.mxu0 0.0
    %307 = vmatpush1.msra.mxu0 %v102
    %308 = vmatprep.subr.mxu0 0.0
    %309 = vmatpush1.msra.mxu0 %v103
    %310 = vmatprep.subr.mxu0 0.0
    %311 = vmatpush1.msra.mxu0 %v104
    %312 = vmatprep.subr.mxu0 0.0
    %313 = vmatpush1.msra.mxu0 %v105
    %314 = vmatprep.subr.mxu0 0.0
    %315 = vmatpush1.msra.mxu0 %v106
    %316 = vmatprep.subr.mxu0 0.0
    %317 = vmatpush1.msra.mxu0 %v107
    %318 = vmatprep.subr.mxu0 0.0
    %319 = vmatpush1.msra.mxu0 %v108
    %320 = vmatprep.subr.mxu0 0.0
    %321 = vmatpush1.msra.mxu0 %v109
    %322 = vmatprep.subr.mxu0 0.0
    %323 = vmatpush1.msra.mxu0 %v110
    %324 = vmatprep.subr.mxu0 0.0
    %325 = vmatpush1.msra.mxu0 %v111
    %326 = vmatprep.subr.mxu0 0.0
    %327 = vmatpush1.msra.mxu0 %v112
    %328 = vmatprep.subr.mxu0 0.0
    %329 = vmatpush1.msra.mxu0 %v113
    %330 = vmatprep.subr.mxu0 0.0
    %331 = vmatpush1.msra.mxu0 %v114
    %332 = vmatprep.subr.mxu0 0.0
    %333 = vmatpush1.msra.mxu0 %v115
    %334 = vmatprep.subr.mxu0 0.0
    %335 = vmatpush1.msra.mxu0 %v116
    %336 = vmatprep.subr.mxu0 0.0
    %337 = vmatpush1.msra.mxu0 %v117
    %338 = vmatprep.subr.mxu0 0.0
    %339 = vmatpush1.msra.mxu0 %v118
    %340 = vmatprep.subr.mxu0 0.0
    %341 = vmatpush1.msra.mxu0 %v119
    %342 = vmatprep.subr.mxu0 0.0
    %343 = vmatpush1.msra.mxu0 %v120
    %344 = vmatprep.subr.mxu0 0.0
    %345 = vmatpush1.msra.mxu0 %v121
    %346 = vmatprep.subr.mxu0 0.0
    %347 = vmatpush1.msra.mxu0 %v122
    %348 = vmatprep.subr.mxu0 0.0
    %349 = vmatpush1.msra.mxu0 %v123
    %350 = vmatprep.subr.mxu0 0.0
    %351 = vmatpush1.msra.mxu0 %v124
    %352 = vmatprep.subr.mxu0 0.0
    %353 = vmatpush1.msra.mxu0 %v125
    %354 = vmatprep.subr.mxu0 0.0
    %355 = vmatpush1.msra.mxu0 %v126
    %356 = vmatprep.subr.mxu0 0.0
    %357 = vmatpush1.msra.mxu0 %v127
    %358 = vmatprep.mubr.f32.mxu0 %v23
    %359 = vmatmul.mubr.f32.gmra.mrb[0].mxu0 %v22
    %v360 = vpop.f32.mrb[0].mxu0
    %v361 = vadd.f32 %v286, %v360
    %v362 = vpop.f32.mrb[0].mxu0
    %363 = vmatprep.mubr.f32.mxu0 %v30
    %364 = vmatmul.mubr.f32.gmra.mrb[0].mxu0 %v29
    %v365 = vpop.f32.mrb[0].mxu0
    %v366 = vadd.f32 %v291, %v365
    %v367 = vpop.f32.mrb[0].mxu0
    %368 = vdwg.mxu0
    %369 = vmatprep.subr.mxu0 0.0
    %370 = vmatpush1.msra.mxu0 %v128
    %371 = vmatprep.subr.mxu0 0.0
    %372 = vmatpush1.msra.mxu0 %v129
    %373 = vmatprep.subr.mxu0 0.0
    %374 = vmatpush1.msra.mxu0 0.0
    %375 = vmatprep.subr.mxu0 0.0
    %376 = vmatpush1.msra.mxu0 0.0
    %377 = vmatprep.subr.mxu0 0.0
    %378 = vmatpush1.msra.mxu0 0.0
    %379 = vmatprep.subr.mxu0 0.0
    %380 = vmatpush1.msra.mxu0 0.0
    %381 = vmatprep.subr.mxu0 0.0
    %382 = vmatpush1.msra.mxu0 0.0
    %383 = vmatprep.subr.mxu0 0.0
    %384 = vmatpush1.msra.mxu0 0.0
    %385 = vmatprep.subr.mxu0 0.0
    %386 = vmatpush1.msra.mxu0 0.0
    %387 = vmatprep.subr.mxu0 0.0
    %388 = vmatpush1.msra.mxu0 0.0
    %389 = vmatprep.subr.mxu0 0.0
    %390 = vmatpush1.msra.mxu0 0.0
    %391 = vmatprep.subr.mxu0 0.0
    %392 = vmatpush1.msra.mxu0 0.0
    %393 = vmatprep.subr.mxu0 0.0
    %394 = vmatpush1.msra.mxu0 0.0
    %395 = vmatprep.subr.mxu0 0.0
    %396 = vmatpush1.msra.mxu0 0.0
    %397 = vmatprep.subr.mxu0 0.0
    %398 = vmatpush1.msra.mxu0 0.0
    %399 = vmatprep.subr.mxu0 0.0
    %400 = vmatpush1.msra.mxu0 0.0
    %401 = vmatprep.subr.mxu0 0.0
    %402 = vmatpush1.msra.mxu0 0.0
    %403 = vmatprep.subr.mxu0 0.0
    %404 = vmatpush1.msra.mxu0 0.0
    %405 = vmatprep.subr.mxu0 0.0
    %406 = vmatpush1.msra.mxu0 0.0
    %407 = vmatprep.subr.mxu0 0.0
    %408 = vmatpush1.msra.mxu0 0.0
    %409 = vmatprep.subr.mxu0 0.0
    %410 = vmatpush1.msra.mxu0 0.0
    %411 = vmatprep.subr.mxu0 0.0
    %412 = vmatpush1.msra.mxu0 0.0
    %413 = vmatprep.subr.mxu0 0.0
    %414 = vmatpush1.msra.mxu0 0.0
    %415 = vmatprep.subr.mxu0 0.0
    %416 = vmatpush1.msra.mxu0 0.0
    %417 = vmatprep.subr.mxu0 0.0
    %418 = vmatpush1.msra.mxu0 0.0
    %419 = vmatprep.subr.mxu0 0.0
    %420 = vmatpush1.msra.mxu0 0.0
    %421 = vmatprep.subr.mxu0 0.0
    %422 = vmatpush1.msra.mxu0 0.0
    %423 = vmatprep.subr.mxu0 0.0
    %424 = vmatpush1.msra.mxu0 0.0
    %425 = vmatprep.subr.mxu0 0.0
    %426 = vmatpush1.msra.mxu0 0.0
    %427 = vmatprep.subr.mxu0 0.0
    %428 = vmatpush1.msra.mxu0 0.0
    %429 = vmatprep.subr.mxu0 0.0
    %430 = vmatpush1.msra.mxu0 0.0
    %431 = vmatprep.subr.mxu0 0.0
    %432 = vmatpush1.msra.mxu0 0.0
    %433 = vmatprep.mubr.f32.mxu0 0.0
    %434 = vmatmul.mubr.f32.gmra.mrb[0].mxu0 %v139
    %v435 = vpop.f32.mrb[0].mxu0
    %v436 = vadd.f32 %v361, %v435
    %v437 = vpop.f32.mrb[0].mxu0
    %438 = vmatprep.mubr.f32.mxu0 0.0
    %439 = vmatmul.mubr.f32.gmra.mrb[0].mxu0 %v142
    %v440 = vpop.f32.mrb[0].mxu0
    %v441 = vadd.f32 %v366, %v440
    %v442 = vpop.f32.mrb[0].mxu0
    %443 = vdwg.mxu0
    %vm444 = vcmask 39936
    %v445 = vsel %vm444, %v436, -inf
    %446 = vmax.xlane.f32.xlu0 %v445
    %v447 = vpop.xlane.xlu0 %446
    %v448 = vsel %vm444, %v441, -inf
    %449 = vmax.xlane.f32.xlu0 %v448
    %v450 = vpop.xlane.xlu0 %449
    %v451 = vlaneseq
    %v452 = vand.u32 %v451, 127
    %vm453 = vcmp.eq.f32.partialorder %v436, %v447
    %vm454 = vcmp.eq.f32.partialorder %v441, %v450
    %v455 = vsel %vm453, %v452, 5
    %v456 = vsel %vm454, %v452, 5
    %v457 = vsel %vm444, %v455, 2147483647
    %v458 = vand.u32 %v457, 65535
    %v459 = vshra.s32 %v457, 16
    %v460 = vcvt.s32.f32 %v458
    %v461 = vcvt.s32.f32 %v459
    %462 = vmin.xlane.f32.xlu0 %v461
    %v463 = vpop.xlane.xlu0 %462
    %vm464 = vcmp.eq.f32.partialorder %v461, %v463
    %v465 = vsel %vm464, %v460, inf
    %466 = vmin.xlane.f32.xlu0 %v465
    %v467 = vpop.xlane.xlu0 %466
    %v468 = vcvt.f32.s32 %v467
    %v469 = vcvt.f32.s32 %v463
    %v470 = vshll.u32 %v469, 16
    %v471 = vadd.s32 %v470, %v468
    %v472 = vsel %vm444, %v456, 2147483647
    %v473 = vand.u32 %v472, 65535
    %v474 = vshra.s32 %v472, 16
    %v475 = vcvt.s32.f32 %v473
    %v476 = vcvt.s32.f32 %v474
    %477 = vmin.xlane.f32.xlu0 %v476
    %v478 = vpop.xlane.xlu0 %477
    %vm479 = vcmp.eq.f32.partialorder %v476, %v478
    %v480 = vsel %vm479, %v475, inf
    %481 = vmin.xlane.f32.xlu0 %v480
    %v482 = vpop.xlane.xlu0 %481
    %v483 = vcvt.f32.s32 %v482
    %v484 = vcvt.f32.s32 %v478
    %v485 = vshll.u32 %v484, 16
    %v486 = vadd.s32 %v485, %v483
    %v487 = vld [vmem:[%s3] sm:$0xff]
    %v488 = vld [vmem:[%s3 + $0x8] sm:$0xff]
    %vm489 = vcmp.eq.s32.totalorder %v471, %v487
    %vm490 = vcmp.eq.s32.totalorder %v486, %v488
    %v491 = vsel %vm489, 1, 0
    %v492 = vsel %vm490, 1, 0
    %v493 = vcvt.s32.f32 %v491
    %v494 = vcvt.s32.f32 %v492
    %vm495 = vcmask 7168
    %v496 = vsel %vm495, %v493, 0.0
    %v497 = vsel %vm495, %v494, 0.0
    %v498 = vadd.f32 %v496, %v497
    %499 = vadd.xlane.f32.xlu0 %v498
    %v500 = vpop.xlane.xlu0 %499
    %v501 = vrot.slane %v500, 4
    %v502 = vadd.f32 %v500, %v501
    %v503 = vrot.slane %v502, 2
    %v504 = vadd.f32 %v502, %v503
    %v505 = vrot.slane %v504, 1
    %v506 = vadd.f32 %v504, %v505
    %s507 = vtos %v506
    %s508 = smul.f32 %s507, 0.0625
    %vm509 = vcmp.lt.s32.totalorder %v452, 2
    %v510 = vstv %s508
    %v511 = vsel %vm509, %v510, 0.0
    %vm512 = vcmask 81920
    %513 = vst.msk [vmem:[#allocation2] sm:$0x1] %vm512, %v511
    // Predicated region
    $region18: #{partial_maml.1} parent=1 // pred_check
      _
    $region19: #{partial_maml.1} parent=1 // pred_check_branch
      %515 = sbr.rel (0) target = $region21
    $region20: #{partial_maml.1} parent=1 // pred_region
      %s517 = ssub.s32 16, 16
      %518 = vsyncadd [#allocation3], %s517
      %s520 = sshll.u32 [#allocation2], 4
      %s521 = int_to_ptr.vmem [resolvable:$true] %s520
      %523 = dma.vmem_to_hbm [thread:$0]  %s521, 16, %s4, [#allocation3]
    $region21: #{partial_maml.1} parent=1 // pred_fallthru
      _
    // Predicated region
    $region22: #{partial_maml.1} parent=1 // pred_check
      _
    $region23: #{partial_maml.1} parent=1 // pred_check_branch
      %525 = sbr.rel (0) target = $region25
    $region24: #{partial_maml.1} parent=1 // pred_region
      %526 = dma.done [#allocation3], 16
    $region25: #{partial_maml.1} parent=1 // pred_fallthru
      _
    %527 = vsyncpa [#allocation3], 1

</llo_original>
